<compile_context>
chip_gen: v5e
topology: v5e:2x2
jax: 0.10.0
libtpu: 0.0.40
codegen_flags: <defaults>
</compile_context>

<pallas_src>
import jax
import jax.numpy as jnp
from jax.experimental import pallas as pl
from jax.experimental.pallas import tpu as pltpu


def mlp_cat_kernel(idx_ref, ta_ref, tb_ref, tc_ref, b1_ref,
                   w2_ref, b2_ref, w3t_ref, b3_ref, out_ref):
    idx = idx_ref[...]                                # [TB, 3+S] int32 (padded rows are all-zero)
    _, ni = idx.shape
    num_set = ni - 3
    v_pad = ta_ref.shape[0]
    mdt = ta_ref.dtype                                # matmul dtype (bf16 by default)

    # ---- one-hot build: (1, V_pad) lane iota, compares broadcast the [TB,1] index columns ----
    lane_v = jax.lax.broadcasted_iota(jnp.int32, (1, v_pad), 1)

    oh1 = (idx[:, 0:1] == lane_v).astype(mdt)         # [TB, V_pad] exact 0/1 in bf16
    oh2 = (idx[:, 1:2] == lane_v).astype(mdt)

    # Set-count matrix (summed one-hots == set sum): accumulate in int32 (works on all chip
    # generations), cast to bf16 only at the matmul boundary (counts <= S are exact in bf16).
    cnt = (idx[:, 3:4] == lane_v).astype(jnp.int32)
    for s in range(1, num_set):
        cnt = cnt + (idx[:, 3 + s:4 + s] == lane_v).astype(jnp.int32)
    cnt_m = cnt.astype(mdt)

    # Masked-mean divisor: count(idx > 0) clamped to 1 (norm[norm==0] = 1 in torch);
    # reciprocal on the EUP (approx is fine given the bf16 weight path).
    valid = (idx[:, 3:] > 0).astype(jnp.float32)                        # [TB, S]
    norm = jnp.maximum(jnp.sum(valid, axis=1, keepdims=True), 1.0)      # [TB, 1]
    inv_norm = pl.reciprocal(norm, approx=True)

    # ---- layer 0: table-folded weights (K = V_pad contractions), f32 accumulate, ReLU ----
    h = (jnp.dot(oh1, ta_ref[...], preferred_element_type=jnp.float32)
         + jnp.dot(oh2, tb_ref[...], preferred_element_type=jnp.float32)
         + jnp.dot(cnt_m, tc_ref[...], preferred_element_type=jnp.float32) * inv_norm
         + b1_ref[...])
    h = jnp.maximum(h, 0.0)

    # ---- layer 1, ReLU (dropout is identity in eval mode) ----
    w2 = w2_ref[...]
    h = jnp.dot(h.astype(w2.dtype), w2, preferred_element_type=jnp.float32) + b2_ref[...]
    h = jnp.maximum(h, 0.0)

    # ---- layer 2 (out_features = 1): [1,H2] x [TB,H2]^T -> lane-dense [1, TB] ----
    out = jax.lax.dot_general(w3t_ref[...], h, (((1,), (1,)), ((), ())),
                              preferred_element_type=jnp.float32) + b3_ref[...]
    out_ref[...] = out.astype(out_ref.dtype)


def _round_up(x, m):
    return ((x + m - 1) // m) * m


def _cdiv(a, b):
    return (a + b - 1) // b


def mlp_cat_forward(indices, ndata, w1, b1, w2, b2, w3, b3, *, matmul_dtype=jnp.bfloat16):
    """indices: [B, 3+S] int32 (ids must lie in [0, num_nodes)). Returns [B, 1] f32 scores."""
    B, ni = indices.shape
    assert ni >= 4, "kernel assumes at least one context-set column (indices[:, 3:])"
    V, C = ndata.shape
    H = w1.shape[1]
    H2 = w2.shape[1]
    assert w1.shape[0] == 3 * C
    # NOTE: ids >= V silently map to a zero embedding (one-hot misses every row).

    # Batch tiling: lane-dense output blocks need TB % 128 == 0 when multi-tile.
    #  * B >= 256: at least 2 grid steps so both v7x TensorCores get work ("parallel" axis),
    #    capped at 2048 to amortize the ~0.35us/step overhead without blowing v5e scoped VMEM.
    #  * B <  256: single tile, block == full padded array (always legal).
    if B >= 256:
        TB = min(2048, _round_up(_cdiv(B, 2), 128))
    else:
        TB = max(8, _round_up(B, 8))
    num_tiles = _cdiv(B, TB)
    B_pad = num_tiles * TB

    idx = indices.astype(jnp.int32)
    if B_pad != B:
        idx = jnp.pad(idx, ((0, B_pad - B), (0, 0)))          # padded rows use id 0 (discarded)

    # Lane-align the vocab and fold the embedding table into the layer-0 weight slices.
    V_pad = _round_up(V, 128)
    table = jnp.asarray(ndata, jnp.float32)
    if V_pad != V:
        table = jnp.pad(table, ((0, V_pad - V), (0, 0)))
    hi = jax.lax.Precision.HIGHEST
    ta = jnp.dot(table, jnp.asarray(w1[:C], jnp.float32), precision=hi).astype(matmul_dtype)
    tb = jnp.dot(table, jnp.asarray(w1[C:2 * C], jnp.float32), precision=hi).astype(matmul_dtype)
    tc = jnp.dot(table, jnp.asarray(w1[2 * C:], jnp.float32), precision=hi).astype(matmul_dtype)

    w2m = jnp.asarray(w2, matmul_dtype)
    b1r = jnp.asarray(b1, jnp.float32).reshape(1, H)
    b2r = jnp.asarray(b2, jnp.float32).reshape(1, H2)
    w3t = jnp.asarray(w3, jnp.float32).reshape(1, H2)          # [H2,1] -> [1,H2]
    b3r = jnp.asarray(b3, jnp.float32).reshape(1, 1)

    def const(shape):
        return pl.BlockSpec(shape, lambda *_i, _n=len(shape): (0,) * _n)

    out_lane = pl.pallas_call(
        mlp_cat_kernel,
        out_shape=jax.ShapeDtypeStruct((1, B_pad), jnp.float32),
        grid=(num_tiles,),
        in_specs=[
            pl.BlockSpec((TB, ni), lambda i: (i, 0)),          # indices: streamed per batch tile
            const((V_pad, H)), const((V_pad, H)), const((V_pad, H)),   # folded table@W1 slices
            const((1, H)),
            const((H, H2)), const((1, H2)),
            const((1, H2)), const((1, 1)),
        ],
        out_specs=pl.BlockSpec((1, TB), lambda i: (0, i)),     # lane-dense output slab
        compiler_params=pltpu.CompilerParams(
            dimension_semantics=("parallel",),
            vmem_limit_bytes=32 * 1024 * 1024),                # covers v5e's 16 MiB default
    )(idx, ta, tb, tc, b1r, w2m, b2r, w3t, b3r)

    return out_lane.reshape(B_pad, 1)[:B]


def reference_forward(indices, ndata, w1, b1, w2, b2, w3, b3):
    """Pure-JAX f32 reference mirroring the PyTorch forward (eval mode)."""
    hi = jax.lax.Precision.HIGHEST
    ing1 = jnp.take(ndata, indices[:, 0], axis=0)
    ing2 = jnp.take(ndata, indices[:, 1], axis=0)
    set_idx = indices[:, 3:]
    set_emb = jnp.take(ndata, set_idx, axis=0)
    ctx_sum = jnp.sum(set_emb, axis=1)
    norm = jnp.sum((set_idx > 0).astype(jnp.float32), axis=1, keepdims=True)
    norm = jnp.where(norm == 0, 1.0, norm)
    ctx = ctx_sum / norm
    x = jnp.concatenate([ing1, ing2, ctx], axis=1)
    x = jnp.maximum(jnp.dot(x, w1, precision=hi) + b1, 0.0)
    x = jnp.maximum(jnp.dot(x, w2, precision=hi) + b2, 0.0)
    return jnp.dot(x, w3, precision=hi) + b3


def _linear_init(key, fan_in, fan_out):
    # PyTorch nn.Linear default: U(-1/sqrt(fan_in), 1/sqrt(fan_in)) for W and b.
    kw, kb = jax.random.split(key)
    bound = 1.0 / jnp.sqrt(float(fan_in))
    w = jax.random.uniform(kw, (fan_in, fan_out), jnp.float32, -bound, bound)
    b = jax.random.uniform(kb, (1, fan_out), jnp.float32, -bound, bound)
    return w, b


if __name__ == "__main__":
    # Small, forward-consistent shapes.
    num_nodes = 100        # adj.num_nodes()
    C = 32                 # in_channels
    H = 64                 # hidden_channels
    H2 = H // 2
    B = 16                 # batch
    S = 8                  # context-set size (indices[:, 3:])

    key = jax.random.PRNGKey(0)
    k_emb, k_l0, k_l1, k_l2, k_idx, k_pad = jax.random.split(key, 6)

    ndata = jax.random.normal(k_emb, (num_nodes, C), jnp.float32)     # nn.Embedding default N(0,1)
    w1, b1 = _linear_init(k_l0, 3 * C, H)
    w2, b2 = _linear_init(k_l1, H, H2)
    w3, b3 = _linear_init(k_l2, H2, 1)

    # indices: cols 0..2 valid ids (>=1), cols 3: set ids with ~30% zero padding.
    indices = jax.random.randint(k_idx, (B, 3 + S), 1, num_nodes, dtype=jnp.int32)
    pad_mask = jax.random.bernoulli(k_pad, 0.3, (B, S))
    indices = indices.at[:, 3:].set(jnp.where(pad_mask, 0, indices[:, 3:]))

    out = jax.block_until_ready(mlp_cat_forward(indices, ndata, w1, b1, w2, b2, w3, b3))
    ref = reference_forward(indices, ndata, w1, b1, w2, b2, w3, b3)
    assert out.shape == (B, 1)
    # Loose tolerance: folded table@W1 / W2 run in bf16 (f32 accumulation) and the masked-mean
    # uses the EUP approx reciprocal, per the perf review.
    assert jnp.allclose(out, ref, atol=3e-2, rtol=3e-2), float(jnp.max(jnp.abs(out - ref)))

    # Multi-tile / padded-batch path (grid >= 2, "parallel" batch axis -> both v7x cores busy).
    B2 = 600
    k_idx2, k_pad2 = jax.random.split(jax.random.PRNGKey(1))
    indices2 = jax.random.randint(k_idx2, (B2, 3 + S), 1, num_nodes, dtype=jnp.int32)
    pad_mask2 = jax.random.bernoulli(k_pad2, 0.3, (B2, S))
    indices2 = indices2.at[:, 3:].set(jnp.where(pad_mask2, 0, indices2[:, 3:]))
    out2 = jax.block_until_ready(mlp_cat_forward(indices2, ndata, w1, b1, w2, b2, w3, b3))
    ref2 = reference_forward(indices2, ndata, w1, b1, w2, b2, w3, b3)
    assert out2.shape == (B2, 1)
    assert jnp.allclose(out2, ref2, atol=3e-2, rtol=3e-2), float(jnp.max(jnp.abs(out2 - ref2)))

    print("KERNEL_OK")
</pallas_src>

<mosaic_0001>
module attributes {stable_mosaic.version = 11 : i64} {
  func.func @mlp_cat_kernel(%arg0: i32, %arg1: memref<16x11xi32, #tpu.memory_space<vmem>>, %arg2: memref<128x64xbf16, #tpu.memory_space<vmem>>, %arg3: memref<128x64xbf16, #tpu.memory_space<vmem>>, %arg4: memref<128x64xbf16, #tpu.memory_space<vmem>>, %arg5: memref<1x64xf32, #tpu.memory_space<vmem>>, %arg6: memref<64x32xbf16, #tpu.memory_space<vmem>>, %arg7: memref<1x32xf32, #tpu.memory_space<vmem>>, %arg8: memref<1x32xf32, #tpu.memory_space<vmem>>, %arg9: memref<1x1xf32, #tpu.memory_space<vmem>>, %arg10: memref<1x16xf32, #tpu.memory_space<vmem>>) attributes {dimension_semantics = [#tpu.dimension_semantics<parallel>], iteration_bounds = array<i64: 1>, scalar_prefetch = 0 : i64, scratch_operands = 0 : i64, tpu.core_type = #tpu.core_type<tc>, window_params = [{transform_indices = @transform_0, window_bounds = array<i64: 16, 11>}, {pipeline_mode = #tpu.pipeline_mode<synchronous>, transform_indices = @transform_1, window_bounds = array<i64: 128, 64>}, {pipeline_mode = #tpu.pipeline_mode<synchronous>, transform_indices = @transform_2, window_bounds = array<i64: 128, 64>}, {pipeline_mode = #tpu.pipeline_mode<synchronous>, transform_indices = @transform_3, window_bounds = array<i64: 128, 64>}, {pipeline_mode = #tpu.pipeline_mode<synchronous>, transform_indices = @transform_4, window_bounds = array<i64: 1, 64>}, {pipeline_mode = #tpu.pipeline_mode<synchronous>, transform_indices = @transform_5, window_bounds = array<i64: 64, 32>}, {pipeline_mode = #tpu.pipeline_mode<synchronous>, transform_indices = @transform_6, window_bounds = array<i64: 1, 32>}, {pipeline_mode = #tpu.pipeline_mode<synchronous>, transform_indices = @transform_7, window_bounds = array<i64: 1, 32>}, {pipeline_mode = #tpu.pipeline_mode<synchronous>, transform_indices = @transform_8, window_bounds = array<i64: 1, 1>}, {transform_indices = @transform_9, window_bounds = array<i64: 1, 16>}]} {
    %c0 = arith.constant 0 : index
    %c0_0 = arith.constant 0 : index
    %0 = vector.load %arg1[%c0, %c0_0] : memref<16x11xi32, #tpu.memory_space<vmem>>, vector<16x11xi32>
    %1 = tpu.iota {dimensions = array<i32: 1>} : vector<1x128xi32>
    %2 = vector.extract_strided_slice %0 {offsets = [0, 0], sizes = [16, 1], strides = [1, 1]} : vector<16x11xi32> to vector<16x1xi32>
    %3 = vector.broadcast %2 : vector<16x1xi32> to vector<16x128xi32>
    %4 = vector.broadcast %1 : vector<1x128xi32> to vector<16x128xi32>
    %5 = arith.cmpi eq, %3, %4 : vector<16x128xi32>
    %6 = arith.extui %5 : vector<16x128xi1> to vector<16x128xi32>
    %7 = arith.sitofp %6 : vector<16x128xi32> to vector<16x128xf32>
    %8 = arith.truncf %7 : vector<16x128xf32> to vector<16x128xbf16>
    %9 = vector.extract_strided_slice %0 {offsets = [0, 1], sizes = [16, 1], strides = [1, 1]} : vector<16x11xi32> to vector<16x1xi32>
    %10 = vector.broadcast %9 : vector<16x1xi32> to vector<16x128xi32>
    %11 = vector.broadcast %1 : vector<1x128xi32> to vector<16x128xi32>
    %12 = arith.cmpi eq, %10, %11 : vector<16x128xi32>
    %13 = arith.extui %12 : vector<16x128xi1> to vector<16x128xi32>
    %14 = arith.sitofp %13 : vector<16x128xi32> to vector<16x128xf32>
    %15 = arith.truncf %14 : vector<16x128xf32> to vector<16x128xbf16>
    %16 = vector.extract_strided_slice %0 {offsets = [0, 3], sizes = [16, 1], strides = [1, 1]} : vector<16x11xi32> to vector<16x1xi32>
    %17 = vector.broadcast %16 : vector<16x1xi32> to vector<16x128xi32>
    %18 = vector.broadcast %1 : vector<1x128xi32> to vector<16x128xi32>
    %19 = arith.cmpi eq, %17, %18 : vector<16x128xi32>
    %20 = arith.extui %19 : vector<16x128xi1> to vector<16x128xi32>
    %21 = vector.extract_strided_slice %0 {offsets = [0, 4], sizes = [16, 1], strides = [1, 1]} : vector<16x11xi32> to vector<16x1xi32>
    %22 = vector.broadcast %21 : vector<16x1xi32> to vector<16x128xi32>
    %23 = vector.broadcast %1 : vector<1x128xi32> to vector<16x128xi32>
    %24 = arith.cmpi eq, %22, %23 : vector<16x128xi32>
    %25 = arith.extui %24 : vector<16x128xi1> to vector<16x128xi32>
    %26 = arith.addi %20, %25 : vector<16x128xi32>
    %27 = vector.extract_strided_slice %0 {offsets = [0, 5], sizes = [16, 1], strides = [1, 1]} : vector<16x11xi32> to vector<16x1xi32>
    %28 = vector.broadcast %27 : vector<16x1xi32> to vector<16x128xi32>
    %29 = vector.broadcast %1 : vector<1x128xi32> to vector<16x128xi32>
    %30 = arith.cmpi eq, %28, %29 : vector<16x128xi32>
    %31 = arith.extui %30 : vector<16x128xi1> to vector<16x128xi32>
    %32 = arith.addi %26, %31 : vector<16x128xi32>
    %33 = vector.extract_strided_slice %0 {offsets = [0, 6], sizes = [16, 1], strides = [1, 1]} : vector<16x11xi32> to vector<16x1xi32>
    %34 = vector.broadcast %33 : vector<16x1xi32> to vector<16x128xi32>
    %35 = vector.broadcast %1 : vector<1x128xi32> to vector<16x128xi32>
    %36 = arith.cmpi eq, %34, %35 : vector<16x128xi32>
    %37 = arith.extui %36 : vector<16x128xi1> to vector<16x128xi32>
    %38 = arith.addi %32, %37 : vector<16x128xi32>
    %39 = vector.extract_strided_slice %0 {offsets = [0, 7], sizes = [16, 1], strides = [1, 1]} : vector<16x11xi32> to vector<16x1xi32>
    %40 = vector.broadcast %39 : vector<16x1xi32> to vector<16x128xi32>
    %41 = vector.broadcast %1 : vector<1x128xi32> to vector<16x128xi32>
    %42 = arith.cmpi eq, %40, %41 : vector<16x128xi32>
    %43 = arith.extui %42 : vector<16x128xi1> to vector<16x128xi32>
    %44 = arith.addi %38, %43 : vector<16x128xi32>
    %45 = vector.extract_strided_slice %0 {offsets = [0, 8], sizes = [16, 1], strides = [1, 1]} : vector<16x11xi32> to vector<16x1xi32>
    %46 = vector.broadcast %45 : vector<16x1xi32> to vector<16x128xi32>
    %47 = vector.broadcast %1 : vector<1x128xi32> to vector<16x128xi32>
    %48 = arith.cmpi eq, %46, %47 : vector<16x128xi32>
    %49 = arith.extui %48 : vector<16x128xi1> to vector<16x128xi32>
    %50 = arith.addi %44, %49 : vector<16x128xi32>
    %51 = vector.extract_strided_slice %0 {offsets = [0, 9], sizes = [16, 1], strides = [1, 1]} : vector<16x11xi32> to vector<16x1xi32>
    %52 = vector.broadcast %51 : vector<16x1xi32> to vector<16x128xi32>
    %53 = vector.broadcast %1 : vector<1x128xi32> to vector<16x128xi32>
    %54 = arith.cmpi eq, %52, %53 : vector<16x128xi32>
    %55 = arith.extui %54 : vector<16x128xi1> to vector<16x128xi32>
    %56 = arith.addi %50, %55 : vector<16x128xi32>
    %57 = vector.extract_strided_slice %0 {offsets = [0, 10], sizes = [16, 1], strides = [1, 1]} : vector<16x11xi32> to vector<16x1xi32>
    %58 = vector.broadcast %57 : vector<16x1xi32> to vector<16x128xi32>
    %59 = vector.broadcast %1 : vector<1x128xi32> to vector<16x128xi32>
    %60 = arith.cmpi eq, %58, %59 : vector<16x128xi32>
    %61 = arith.extui %60 : vector<16x128xi1> to vector<16x128xi32>
    %62 = arith.addi %56, %61 : vector<16x128xi32>
    %63 = arith.sitofp %62 : vector<16x128xi32> to vector<16x128xbf16>
    %64 = vector.extract_strided_slice %0 {offsets = [0, 3], sizes = [16, 8], strides = [1, 1]} : vector<16x11xi32> to vector<16x8xi32>
    %c0_i32 = arith.constant 0 : i32
    %65 = vector.broadcast %c0_i32 : i32 to vector<16x8xi32>
    %66 = arith.cmpi sgt, %64, %65 : vector<16x8xi32>
    %67 = arith.extui %66 : vector<16x8xi1> to vector<16x8xi32>
    %68 = arith.sitofp %67 : vector<16x8xi32> to vector<16x8xf32>
    %cst = arith.constant dense<0.000000e+00> : vector<16xf32>
    %69 = vector.multi_reduction <add>, %68, %cst [1] : vector<16x8xf32> to vector<16xf32>
    %70 = vector.shape_cast %69 : vector<16xf32> to vector<16x1xf32>
    %cst_1 = arith.constant 1.000000e+00 : f32
    %71 = vector.broadcast %cst_1 : f32 to vector<16x1xf32>
    %72 = arith.maximumf %70, %71 : vector<16x1xf32>
    %73 = tpu.reciprocal %72 {approx = true} : vector<16x1xf32> -> vector<16x1xf32>
    %c0_2 = arith.constant 0 : index
    %c0_3 = arith.constant 0 : index
    %74 = vector.load %arg2[%c0_2, %c0_3] : memref<128x64xbf16, #tpu.memory_space<vmem>>, vector<128x64xbf16>
    %cst_4 = arith.constant dense<0.000000e+00> : vector<16x64xf32>
    %75 = tpu.matmul %8, %74, %cst_4 {dimension_numbers = #tpu.dot_dimension_numbers<[1], [0], [0], [1], [0, 0, 1, 1], [], []>} : vector<16x128xbf16>, vector<128x64xbf16>, vector<16x64xf32> -> vector<16x64xf32>
    %c0_5 = arith.constant 0 : index
    %c0_6 = arith.constant 0 : index
    %76 = vector.load %arg3[%c0_5, %c0_6] : memref<128x64xbf16, #tpu.memory_space<vmem>>, vector<128x64xbf16>
    %cst_7 = arith.constant dense<0.000000e+00> : vector<16x64xf32>
    %77 = tpu.matmul %15, %76, %cst_7 {dimension_numbers = #tpu.dot_dimension_numbers<[1], [0], [0], [1], [0, 0, 1, 1], [], []>} : vector<16x128xbf16>, vector<128x64xbf16>, vector<16x64xf32> -> vector<16x64xf32>
    %78 = arith.addf %75, %77 : vector<16x64xf32>
    %c0_8 = arith.constant 0 : index
    %c0_9 = arith.constant 0 : index
    %79 = vector.load %arg4[%c0_8, %c0_9] : memref<128x64xbf16, #tpu.memory_space<vmem>>, vector<128x64xbf16>
    %cst_10 = arith.constant dense<0.000000e+00> : vector<16x64xf32>
    %80 = tpu.matmul %63, %79, %cst_10 {dimension_numbers = #tpu.dot_dimension_numbers<[1], [0], [0], [1], [0, 0, 1, 1], [], []>} : vector<16x128xbf16>, vector<128x64xbf16>, vector<16x64xf32> -> vector<16x64xf32>
    %81 = vector.broadcast %73 : vector<16x1xf32> to vector<16x64xf32>
    %82 = arith.mulf %80, %81 : vector<16x64xf32>
    %83 = arith.addf %78, %82 : vector<16x64xf32>
    %c0_11 = arith.constant 0 : index
    %c0_12 = arith.constant 0 : index
    %84 = vector.load %arg5[%c0_11, %c0_12] : memref<1x64xf32, #tpu.memory_space<vmem>>, vector<1x64xf32>
    %85 = vector.broadcast %84 : vector<1x64xf32> to vector<16x64xf32>
    %86 = arith.addf %83, %85 : vector<16x64xf32>
    %cst_13 = arith.constant 0.000000e+00 : f32
    %87 = vector.broadcast %cst_13 : f32 to vector<16x64xf32>
    %88 = arith.maximumf %86, %87 : vector<16x64xf32>
    %c0_14 = arith.constant 0 : index
    %c0_15 = arith.constant 0 : index
    %89 = vector.load %arg6[%c0_14, %c0_15] : memref<64x32xbf16, #tpu.memory_space<vmem>>, vector<64x32xbf16>
    %90 = arith.truncf %88 : vector<16x64xf32> to vector<16x64xbf16>
    %cst_16 = arith.constant dense<0.000000e+00> : vector<16x32xf32>
    %91 = tpu.matmul %90, %89, %cst_16 {dimension_numbers = #tpu.dot_dimension_numbers<[1], [0], [0], [1], [0, 0, 1, 1], [], []>} : vector<16x64xbf16>, vector<64x32xbf16>, vector<16x32xf32> -> vector<16x32xf32>
    %c0_17 = arith.constant 0 : index
    %c0_18 = arith.constant 0 : index
    %92 = vector.load %arg7[%c0_17, %c0_18] : memref<1x32xf32, #tpu.memory_space<vmem>>, vector<1x32xf32>
    %93 = vector.broadcast %92 : vector<1x32xf32> to vector<16x32xf32>
    %94 = arith.addf %91, %93 : vector<16x32xf32>
    %cst_19 = arith.constant 0.000000e+00 : f32
    %95 = vector.broadcast %cst_19 : f32 to vector<16x32xf32>
    %96 = arith.maximumf %94, %95 : vector<16x32xf32>
    %c0_20 = arith.constant 0 : index
    %c0_21 = arith.constant 0 : index
    %97 = vector.load %arg8[%c0_20, %c0_21] : memref<1x32xf32, #tpu.memory_space<vmem>>, vector<1x32xf32>
    %cst_22 = arith.constant dense<0.000000e+00> : vector<1x16xf32>
    %98 = tpu.matmul %97, %96, %cst_22 {dimension_numbers = #tpu.dot_dimension_numbers<[1], [1], [0], [0], [0, 0, 1, 0], [], []>} : vector<1x32xf32>, vector<16x32xf32>, vector<1x16xf32> -> vector<1x16xf32>
    %c0_23 = arith.constant 0 : index
    %c0_24 = arith.constant 0 : index
    %99 = vector.load %arg9[%c0_23, %c0_24] : memref<1x1xf32, #tpu.memory_space<vmem>>, vector<1x1xf32>
    %100 = vector.broadcast %99 : vector<1x1xf32> to vector<1x16xf32>
    %101 = arith.addf %98, %100 : vector<1x16xf32>
    %c0_25 = arith.constant 0 : index
    %c0_26 = arith.constant 0 : index
    %102 = vector.load %arg10[%c0_25, %c0_26] : memref<1x16xf32, #tpu.memory_space<vmem>>, vector<1x16xf32>
    tpu.vector_store %arg10[%c0_25, %c0_26], %101 {strides = array<i32>} : memref<1x16xf32, #tpu.memory_space<vmem>>, vector<1x16xf32>,
    return
  }
  func.func @transform_0(%arg0: i32) -> (i32, i32) {
    %c0_i32 = arith.constant 0 : i32
    %c0_i32_0 = arith.constant 0 : i32
    return %arg0, %c0_i32 : i32, i32
  }
  func.func @transform_1(%arg0: i32) -> (i32, i32) {
    %c0_i32 = arith.constant 0 : i32
    %c0_i32_0 = arith.constant 0 : i32
    %c0_i32_1 = arith.constant 0 : i32
    return %c0_i32, %c0_i32_0 : i32, i32
  }
  func.func @transform_2(%arg0: i32) -> (i32, i32) {
    %c0_i32 = arith.constant 0 : i32
    %c0_i32_0 = arith.constant 0 : i32
    %c0_i32_1 = arith.constant 0 : i32
    return %c0_i32, %c0_i32_0 : i32, i32
  }
  func.func @transform_3(%arg0: i32) -> (i32, i32) {
    %c0_i32 = arith.constant 0 : i32
    %c0_i32_0 = arith.constant 0 : i32
    %c0_i32_1 = arith.constant 0 : i32
    return %c0_i32, %c0_i32_0 : i32, i32
  }
  func.func @transform_4(%arg0: i32) -> (i32, i32) {
    %c0_i32 = arith.constant 0 : i32
    %c0_i32_0 = arith.constant 0 : i32
    %c0_i32_1 = arith.constant 0 : i32
    return %c0_i32, %c0_i32_0 : i32, i32
  }
  func.func @transform_5(%arg0: i32) -> (i32, i32) {
    %c0_i32 = arith.constant 0 : i32
    %c0_i32_0 = arith.constant 0 : i32
    %c0_i32_1 = arith.constant 0 : i32
    return %c0_i32, %c0_i32_0 : i32, i32
  }
  func.func @transform_6(%arg0: i32) -> (i32, i32) {
    %c0_i32 = arith.constant 0 : i32
    %c0_i32_0 = arith.constant 0 : i32
    %c0_i32_1 = arith.constant 0 : i32
    return %c0_i32, %c0_i32_0 : i32, i32
  }
  func.func @transform_7(%arg0: i32) -> (i32, i32) {
    %c0_i32 = arith.constant 0 : i32
    %c0_i32_0 = arith.constant 0 : i32
    %c0_i32_1 = arith.constant 0 : i32
    return %c0_i32, %c0_i32_0 : i32, i32
  }
  func.func @transform_8(%arg0: i32) -> (i32, i32) {
    %c0_i32 = arith.constant 0 : i32
    %c0_i32_0 = arith.constant 0 : i32
    %c0_i32_1 = arith.constant 0 : i32
    return %c0_i32, %c0_i32_0 : i32, i32
  }
  func.func @transform_9(%arg0: i32) -> (i32, i32) {
    %c0_i32 = arith.constant 0 : i32
    %c0_i32_0 = arith.constant 0 : i32
    return %c0_i32, %arg0 : i32, i32
  }
}

</mosaic_0001>

<llo_original>
// kernel: tpu_custom_call.1
$region0: #{tpu_custom_call.1}
  #allocation0 [shape = 'u32[]', space=smem, size = 0x4, offset = 0x4, fixed_abs, tag = 'smem constant byte address 0x4 - core index']
  #allocation1 [shape = 'u32[72,128]{1,0:T(1,128)}', space=vmem, size = 0x9000, scoped, tag = 'internal scratch']
  #allocation2 [shape = 'f32[1,1]{1,0:T(1,128)S(1)}', space=vmem, size = 0x200, scoped, tag = 'scoped memory for tpu_custom_call.1']
  %s0 = inlined_call_operand.vmem [shape: s32[16,11], index: 0, kind: input, shape index: {}]
  %s1 = inlined_call_operand.vmem [shape: bf16[128,64], index: 1, kind: input, shape index: {}]
  %s2 = inlined_call_operand.vmem [shape: bf16[128,64], index: 2, kind: input, shape index: {}]
  %s3 = inlined_call_operand.vmem [shape: bf16[128,64], index: 3, kind: input, shape index: {}]
  %s4 = inlined_call_operand.vmem [shape: f32[1,64], index: 4, kind: input, shape index: {}]
  %s5 = inlined_call_operand.vmem [shape: bf16[64,32], index: 5, kind: input, shape index: {}]
  %s6 = inlined_call_operand.vmem [shape: f32[1,32], index: 6, kind: input, shape index: {}]
  %s7 = inlined_call_operand.vmem [shape: f32[1,32], index: 7, kind: input, shape index: {}]
  %s8 = inlined_call_operand.<no memory space> [shape: f32[1,1], index: 8, kind: input, shape index: {}]
  %s9 = inlined_call_operand.hbm [shape: f32[1,16], index: 9, kind: output, shape index: {}]
  %s10 = sld [smem:[#allocation0]]
  $region46: #{tpu_custom_call.1} parent=0
    _
  %s12 = ssub.s32 1, %s10
  %s13 = scalar_select 0, %s12, %s10
  %v14 = vstv %s8
  %15 = vst [vmem:[#allocation2] sm:$0x1] %v14
  $region1: #{tpu_custom_call.1} parent=0
    #allocation3 [shape = 'u8[512]{0}', space=vmem, size = 0x400, scoped, tag = 'output window, operand 0, single buffered']
    #allocation4 [shape = 's32[1]{0}', space=sflag, size = 0x4, scoped, tag = 'scoped memory for tpu_custom_call.1']
    %16 = vsyncpa [#allocation4], 0
    // Predicated region
    $region2: #{tpu_custom_call.1} parent=1 // pred_check
      _
    $region3: #{tpu_custom_call.1} parent=1 // pred_check_branch
      %18 = sbr.rel (0) target = $region5
    $region4: #{tpu_custom_call.1} parent=1 // pred_region
      _
    $region5: #{tpu_custom_call.1} parent=1 // pred_fallthru
      _
    // Predicated region
    $region6: #{tpu_custom_call.1} parent=1 // pred_check
      _
    $region7: #{tpu_custom_call.1} parent=1 // pred_check_branch
      %20 = sbr.rel (0) target = $region9
    $region8: #{tpu_custom_call.1} parent=1 // pred_region
      _
    $region9: #{tpu_custom_call.1} parent=1 // pred_fallthru
      _
    // Predicated region
    $region10: #{tpu_custom_call.1} parent=1 // pred_check
      _
    $region11: #{tpu_custom_call.1} parent=1 // pred_check_branch
      %22 = sbr.rel (0) target = $region13
    $region12: #{tpu_custom_call.1} parent=1 // pred_region
      _
    $region13: #{tpu_custom_call.1} parent=1 // pred_fallthru
      _
    // Predicated region
    $region14: #{tpu_custom_call.1} parent=1 // pred_check
      _
    $region15: #{tpu_custom_call.1} parent=1 // pred_check_branch
      %24 = sbr.rel (0) target = $region17
    $region16: #{tpu_custom_call.1} parent=1 // pred_region
      _
    $region17: #{tpu_custom_call.1} parent=1 // pred_fallthru
      _
    // Predicated region
    $region18: #{tpu_custom_call.1} parent=1 // pred_check
      _
    $region19: #{tpu_custom_call.1} parent=1 // pred_check_branch
      %26 = sbr.rel (0) target = $region21
    $region20: #{tpu_custom_call.1} parent=1 // pred_region
      _
    $region21: #{tpu_custom_call.1} parent=1 // pred_fallthru
      _
    // Predicated region
    $region22: #{tpu_custom_call.1} parent=1 // pred_check
      _
    $region23: #{tpu_custom_call.1} parent=1 // pred_check_branch
      %28 = sbr.rel (0) target = $region25
    $region24: #{tpu_custom_call.1} parent=1 // pred_region
      _
    $region25: #{tpu_custom_call.1} parent=1 // pred_fallthru
      _
    // Predicated region
    $region26: #{tpu_custom_call.1} parent=1 // pred_check
      _
    $region27: #{tpu_custom_call.1} parent=1 // pred_check_branch
      %30 = sbr.rel (0) target = $region29
    $region28: #{tpu_custom_call.1} parent=1 // pred_region
      _
    $region29: #{tpu_custom_call.1} parent=1 // pred_fallthru
      _
    // Predicated region
    $region30: #{tpu_custom_call.1} parent=1 // pred_check
      _
    $region31: #{tpu_custom_call.1} parent=1 // pred_check_branch
      %32 = sbr.rel (0) target = $region33
    $region32: #{tpu_custom_call.1} parent=1 // pred_region
      _
    $region33: #{tpu_custom_call.1} parent=1 // pred_fallthru
      _
    // Predicated region
    $region34: #{tpu_custom_call.1} parent=1 // pred_check
      _
    $region35: #{tpu_custom_call.1} parent=1 // pred_check_branch
      %34 = sbr.rel (0) target = $region37
    $region36: #{tpu_custom_call.1} parent=1 // pred_region
      _
    $region37: #{tpu_custom_call.1} parent=1 // pred_fallthru
      _
    %v36 = vld [vmem:[%s0] sm:$0xff]
    %v37 = vld [vmem:[%s0 + $0x8] sm:$0xff]
    %v38 = vlaneseq
    %v39 = vand.u32 %v38, 127
    %40 = vset.pattern.permute.xlu0 0
    %41 = vperm.xlu0 %40, %v36
    %v42 = vpop.permute.xlu0 %41
    %43 = vset.pattern.permute.xlu0 0
    %44 = vperm.xlu0 %43, %v37
    %v45 = vpop.permute.xlu0 %44
    %vm46 = vcmp.eq.s32.totalorder %v42, %v39
    %vm47 = vcmp.eq.s32.totalorder %v45, %v39
    %v48 = vsel %vm46, 1, 0
    %v49 = vsel %vm47, 1, 0
    %v50 = vcvt.s32.f32 %v48
    %v51 = vcvt.s32.f32 %v49
    %v52 = vpack.c.bf16 %v51, %v50
    %53 = vset.pattern.permute.xlu0 1
    %54 = vperm.xlu0 %53, %v36
    %v55 = vpop.permute.xlu0 %54
    %56 = vset.pattern.permute.xlu0 1
    %57 = vperm.xlu0 %56, %v37
    %v58 = vpop.permute.xlu0 %57
    %vm59 = vcmp.eq.s32.totalorder %v55, %v39
    %vm60 = vcmp.eq.s32.totalorder %v58, %v39
    %v61 = vsel %vm59, 1, 0
    %v62 = vsel %vm60, 1, 0
    %v63 = vcvt.s32.f32 %v61
    %v64 = vcvt.s32.f32 %v62
    %v65 = vpack.c.bf16 %v64, %v63
    %66 = vset.pattern.permute.xlu0 3
    %67 = vperm.xlu0 %66, %v36
    %v68 = vpop.permute.xlu0 %67
    %69 = vset.pattern.permute.xlu0 3
    %70 = vperm.xlu0 %69, %v37
    %v71 = vpop.permute.xlu0 %70
    %vm72 = vcmp.eq.s32.totalorder %v68, %v39
    %vm73 = vcmp.eq.s32.totalorder %v71, %v39
    %v74 = vsel %vm72, 1, 0
    %v75 = vsel %vm73, 1, 0
    %76 = vset.pattern.permute.xlu0 4
    %77 = vperm.xlu0 %76, %v36
    %v78 = vpop.permute.xlu0 %77
    %79 = vset.pattern.permute.xlu0 4
    %80 = vperm.xlu0 %79, %v37
    %v81 = vpop.permute.xlu0 %80
    %vm82 = vcmp.eq.s32.totalorder %v78, %v39
    %vm83 = vcmp.eq.s32.totalorder %v81, %v39
    %v84 = vsel %vm82, 1, 0
    %v85 = vsel %vm83, 1, 0
    %v86 = vadd.s32 %v74, %v84
    %v87 = vadd.s32 %v75, %v85
    %88 = vset.pattern.permute.xlu0 5
    %89 = vperm.xlu0 %88, %v36
    %v90 = vpop.permute.xlu0 %89
    %91 = vset.pattern.permute.xlu0 5
    %92 = vperm.xlu0 %91, %v37
    %v93 = vpop.permute.xlu0 %92
    %vm94 = vcmp.eq.s32.totalorder %v90, %v39
    %vm95 = vcmp.eq.s32.totalorder %v93, %v39
    %v96 = vsel %vm94, 1, 0
    %v97 = vsel %vm95, 1, 0
    %v98 = vadd.s32 %v86, %v96
    %v99 = vadd.s32 %v87, %v97
    %100 = vset.pattern.permute.xlu0 6
    %101 = vperm.xlu0 %100, %v36
    %v102 = vpop.permute.xlu0 %101
    %103 = vset.pattern.permute.xlu0 6
    %104 = vperm.xlu0 %103, %v37
    %v105 = vpop.permute.xlu0 %104
    %vm106 = vcmp.eq.s32.totalorder %v102, %v39
    %vm107 = vcmp.eq.s32.totalorder %v105, %v39
    %v108 = vsel %vm106, 1, 0
    %v109 = vsel %vm107, 1, 0
    %v110 = vadd.s32 %v98, %v108
    %v111 = vadd.s32 %v99, %v109
    %112 = vset.pattern.permute.xlu0 7
    %113 = vperm.xlu0 %112, %v36
    %v114 = vpop.permute.xlu0 %113
    %115 = vset.pattern.permute.xlu0 7
    %116 = vperm.xlu0 %115, %v37
    %v117 = vpop.permute.xlu0 %116
    %vm118 = vcmp.eq.s32.totalorder %v114, %v39
    %vm119 = vcmp.eq.s32.totalorder %v117, %v39
    %v120 = vsel %vm118, 1, 0
    %v121 = vsel %vm119, 1, 0
    %v122 = vadd.s32 %v110, %v120
    %v123 = vadd.s32 %v111, %v121
    %124 = vset.pattern.permute.xlu0 8
    %125 = vperm.xlu0 %124, %v36
    %v126 = vpop.permute.xlu0 %125
    %127 = vset.pattern.permute.xlu0 8
    %128 = vperm.xlu0 %127, %v37
    %v129 = vpop.permute.xlu0 %128
    %vm130 = vcmp.eq.s32.totalorder %v126, %v39
    %vm131 = vcmp.eq.s32.totalorder %v129, %v39
    %v132 = vsel %vm130, 1, 0
    %v133 = vsel %vm131, 1, 0
    %v134 = vadd.s32 %v122, %v132
    %v135 = vadd.s32 %v123, %v133
    %136 = vset.pattern.permute.xlu0 9
    %137 = vperm.xlu0 %136, %v36
    %v138 = vpop.permute.xlu0 %137
    %139 = vset.pattern.permute.xlu0 9
    %140 = vperm.xlu0 %139, %v37
    %v141 = vpop.permute.xlu0 %140
    %vm142 = vcmp.eq.s32.totalorder %v138, %v39
    %vm143 = vcmp.eq.s32.totalorder %v141, %v39
    %v144 = vsel %vm142, 1, 0
    %v145 = vsel %vm143, 1, 0
    %v146 = vadd.s32 %v134, %v144
    %v147 = vadd.s32 %v135, %v145
    %148 = vset.pattern.permute.xlu0 10
    %149 = vperm.xlu0 %148, %v36
    %v150 = vpop.permute.xlu0 %149
    %151 = vset.pattern.permute.xlu0 10
    %152 = vperm.xlu0 %151, %v37
    %v153 = vpop.permute.xlu0 %152
    %vm154 = vcmp.eq.s32.totalorder %v150, %v39
    %vm155 = vcmp.eq.s32.totalorder %v153, %v39
    %v156 = vsel %vm154, 1, 0
    %v157 = vsel %vm155, 1, 0
    %v158 = vadd.s32 %v146, %v156
    %v159 = vadd.s32 %v147, %v157
    %v160 = vcvt.s32.f32 %v158
    %v161 = vcvt.s32.f32 %v159
    %v162 = vpack.c.bf16 %v161, %v160
    %vm163 = vcmp.gt.s32.totalorder %v36, 0
    %vm164 = vcmp.gt.s32.totalorder %v37, 0
    %v165 = vsel %vm163, 1, 0
    %v166 = vsel %vm164, 1, 0
    %v167 = vcvt.s32.f32 %v165
    %v168 = vcvt.s32.f32 %v166
    %171 = vrot.lane.b32.xlu0 %v167, 125
    %v172 = vpop.permute.xlu0 %171
    %173 = vrot.lane.b32.xlu0 %v168, 125
    %v174 = vpop.permute.xlu0 %173
    %vm177 = vcmask 64512
    %v178 = vsel %vm177, %v172, 0.0
    %179 = vadd.xlane.f32.xlu0 %v178
    %v180 = vpop.xlane.xlu0 %179
    %v181 = vsel %vm177, %v174, 0.0
    %182 = vadd.xlane.f32.xlu0 %v181
    %v183 = vpop.xlane.xlu0 %182
    %v184 = vmax.f32 %v180, 1.0
    %v185 = vmax.f32 %v183, 1.0
    %v186 = vrcp.pop %v184
    %v187 = vrcp.pop %v185
    %v188 = vld [vmem:[%s1] sm:$0xf]
    %v189 = vld [vmem:[%s1 + $0x4] sm:$0xf]
    %v190 = vld [vmem:[%s1 + $0x8] sm:$0xf]
    %v191 = vld [vmem:[%s1 + $0xc] sm:$0xf]
    %v192 = vld [vmem:[%s1 + $0x10] sm:$0xf]
    %v193 = vld [vmem:[%s1 + $0x14] sm:$0xf]
    %v194 = vld [vmem:[%s1 + $0x18] sm:$0xf]
    %v195 = vld [vmem:[%s1 + $0x1c] sm:$0xf]
    %v196 = vld [vmem:[%s1 + $0x20] sm:$0xf]
    %v197 = vld [vmem:[%s1 + $0x24] sm:$0xf]
    %v198 = vld [vmem:[%s1 + $0x28] sm:$0xf]
    %v199 = vld [vmem:[%s1 + $0x2c] sm:$0xf]
    %v200 = vld [vmem:[%s1 + $0x30] sm:$0xf]
    %v201 = vld [vmem:[%s1 + $0x34] sm:$0xf]
    %v202 = vld [vmem:[%s1 + $0x38] sm:$0xf]
    %v203 = vld [vmem:[%s1 + $0x3c] sm:$0xf]
    %v204 = vld [vmem:[%s2] sm:$0xf]
    %v205 = vld [vmem:[%s2 + $0x4] sm:$0xf]
    %v206 = vld [vmem:[%s2 + $0x8] sm:$0xf]
    %v207 = vld [vmem:[%s2 + $0xc] sm:$0xf]
    %v208 = vld [vmem:[%s2 + $0x10] sm:$0xf]
    %v209 = vld [vmem:[%s2 + $0x14] sm:$0xf]
    %v210 = vld [vmem:[%s2 + $0x18] sm:$0xf]
    %v211 = vld [vmem:[%s2 + $0x1c] sm:$0xf]
    %v212 = vld [vmem:[%s2 + $0x20] sm:$0xf]
    %v213 = vld [vmem:[%s2 + $0x24] sm:$0xf]
    %v214 = vld [vmem:[%s2 + $0x28] sm:$0xf]
    %v215 = vld [vmem:[%s2 + $0x2c] sm:$0xf]
    %v216 = vld [vmem:[%s2 + $0x30] sm:$0xf]
    %v217 = vld [vmem:[%s2 + $0x34] sm:$0xf]
    %v218 = vld [vmem:[%s2 + $0x38] sm:$0xf]
    %v219 = vld [vmem:[%s2 + $0x3c] sm:$0xf]
    %v236 = vunpack.c.l.b16 %v204
    %v237 = vunpack.c.l.b16 %v205
    %v238 = vunpack.c.l.b16 %v206
    %v239 = vunpack.c.l.b16 %v207
    %v240 = vunpack.c.l.b16 %v208
    %v241 = vunpack.c.l.b16 %v209
    %v242 = vunpack.c.l.b16 %v210
    %v243 = vunpack.c.l.b16 %v211
    %v244 = vunpack.c.l.b16 %v212
    %v245 = vunpack.c.l.b16 %v213
    %v246 = vunpack.c.l.b16 %v214
    %v247 = vunpack.c.l.b16 %v215
    %v248 = vunpack.c.l.b16 %v216
    %v249 = vunpack.c.l.b16 %v217
    %v250 = vunpack.c.l.b16 %v218
    %v251 = vunpack.c.l.b16 %v219
    %v252 = vpack.c.b16 %v237, %v236
    %v253 = vpack.c.b16 %v239, %v238
    %v254 = vpack.c.b16 %v241, %v240
    %v255 = vpack.c.b16 %v243, %v242
    %v256 = vpack.c.b16 %v245, %v244
    %v257 = vpack.c.b16 %v247, %v246
    %v258 = vpack.c.b16 %v249, %v248
    %v259 = vpack.c.b16 %v251, %v250
    %268 = vmatpush.bf16.msra.mxu0 %v259
    %269 = vmatpush.bf16.msra.mxu0 %v258
    %270 = vmatpush.bf16.msra.mxu0 %v257
    %271 = vmatpush.bf16.msra.mxu0 %v256
    %272 = vmatpush.bf16.msra.mxu0 %v255
    %273 = vmatpush.bf16.msra.mxu0 %v254
    %274 = vmatpush.bf16.msra.mxu0 %v253
    %275 = vmatpush.bf16.msra.mxu0 %v252
    %276 = vmatmul.bf16.gmra.mxu0 %v65
    %v277 = vpop.f32.mrf.mxu0
    %v278 = vadd.f32 0.0, %v277
    %v279 = vpop.f32.mrf.mxu0
    %v280 = vadd.f32 0.0, %v279
    %281 = vdwg.mxu0
    %v298 = vunpack.c.l.b16 %v188
    %v299 = vunpack.c.l.b16 %v189
    %v300 = vunpack.c.l.b16 %v190
    %v301 = vunpack.c.l.b16 %v191
    %v302 = vunpack.c.l.b16 %v192
    %v303 = vunpack.c.l.b16 %v193
    %v304 = vunpack.c.l.b16 %v194
    %v305 = vunpack.c.l.b16 %v195
    %v306 = vunpack.c.l.b16 %v196
    %v307 = vunpack.c.l.b16 %v197
    %v308 = vunpack.c.l.b16 %v198
    %v309 = vunpack.c.l.b16 %v199
    %v310 = vunpack.c.l.b16 %v200
    %v311 = vunpack.c.l.b16 %v201
    %v312 = vunpack.c.l.b16 %v202
    %v313 = vunpack.c.l.b16 %v203
    %v314 = vpack.c.b16 %v299, %v298
    %v315 = vpack.c.b16 %v301, %v300
    %v316 = vpack.c.b16 %v303, %v302
    %v317 = vpack.c.b16 %v305, %v304
    %v318 = vpack.c.b16 %v307, %v306
    %v319 = vpack.c.b16 %v309, %v308
    %v320 = vpack.c.b16 %v311, %v310
    %v321 = vpack.c.b16 %v313, %v312
    %330 = vmatpush.bf16.msra.mxu0 %v321
    %331 = vmatpush.bf16.msra.mxu0 %v320
    %332 = vmatpush.bf16.msra.mxu0 %v319
    %333 = vmatpush.bf16.msra.mxu0 %v318
    %334 = vmatpush.bf16.msra.mxu0 %v317
    %335 = vmatpush.bf16.msra.mxu0 %v316
    %336 = vmatpush.bf16.msra.mxu0 %v315
    %337 = vmatpush.bf16.msra.mxu0 %v314
    %338 = vmatmul.bf16.gmra.mxu0 %v52
    %v339 = vpop.f32.mrf.mxu0
    %v340 = vadd.f32 %v278, %v339
    %v341 = vpop.f32.mrf.mxu0
    %v342 = vadd.f32 %v280, %v341
    %343 = vdwg.mxu0
    %v344 = vld [vmem:[%s3] sm:$0xf]
    %v345 = vld [vmem:[%s3 + $0x4] sm:$0xf]
    %v346 = vld [vmem:[%s3 + $0x8] sm:$0xf]
    %v347 = vld [vmem:[%s3 + $0xc] sm:$0xf]
    %v348 = vld [vmem:[%s3 + $0x10] sm:$0xf]
    %v349 = vld [vmem:[%s3 + $0x14] sm:$0xf]
    %v350 = vld [vmem:[%s3 + $0x18] sm:$0xf]
    %v351 = vld [vmem:[%s3 + $0x1c] sm:$0xf]
    %v352 = vld [vmem:[%s3 + $0x20] sm:$0xf]
    %v353 = vld [vmem:[%s3 + $0x24] sm:$0xf]
    %v354 = vld [vmem:[%s3 + $0x28] sm:$0xf]
    %v355 = vld [vmem:[%s3 + $0x2c] sm:$0xf]
    %v356 = vld [vmem:[%s3 + $0x30] sm:$0xf]
    %v357 = vld [vmem:[%s3 + $0x34] sm:$0xf]
    %v358 = vld [vmem:[%s3 + $0x38] sm:$0xf]
    %v359 = vld [vmem:[%s3 + $0x3c] sm:$0xf]
    %v376 = vunpack.c.l.b16 %v344
    %v377 = vunpack.c.l.b16 %v345
    %v378 = vunpack.c.l.b16 %v346
    %v379 = vunpack.c.l.b16 %v347
    %v380 = vunpack.c.l.b16 %v348
    %v381 = vunpack.c.l.b16 %v349
    %v382 = vunpack.c.l.b16 %v350
    %v383 = vunpack.c.l.b16 %v351
    %v384 = vunpack.c.l.b16 %v352
    %v385 = vunpack.c.l.b16 %v353
    %v386 = vunpack.c.l.b16 %v354
    %v387 = vunpack.c.l.b16 %v355
    %v388 = vunpack.c.l.b16 %v356
    %v389 = vunpack.c.l.b16 %v357
    %v390 = vunpack.c.l.b16 %v358
    %v391 = vunpack.c.l.b16 %v359
    %v392 = vpack.c.b16 %v377, %v376
    %v393 = vpack.c.b16 %v379, %v378
    %v394 = vpack.c.b16 %v381, %v380
    %v395 = vpack.c.b16 %v383, %v382
    %v396 = vpack.c.b16 %v385, %v384
    %v397 = vpack.c.b16 %v387, %v386
    %v398 = vpack.c.b16 %v389, %v388
    %v399 = vpack.c.b16 %v391, %v390
    %408 = vmatpush.bf16.msra.mxu0 %v399
    %409 = vmatpush.bf16.msra.mxu0 %v398
    %410 = vmatpush.bf16.msra.mxu0 %v397
    %411 = vmatpush.bf16.msra.mxu0 %v396
    %412 = vmatpush.bf16.msra.mxu0 %v395
    %413 = vmatpush.bf16.msra.mxu0 %v394
    %414 = vmatpush.bf16.msra.mxu0 %v393
    %415 = vmatpush.bf16.msra.mxu0 %v392
    %416 = vmatmul.bf16.gmra.mxu0 %v162
    %v417 = vpop.f32.mrf.mxu0
    %v418 = vadd.f32 0.0, %v417
    %v419 = vpop.f32.mrf.mxu0
    %v420 = vadd.f32 0.0, %v419
    %421 = vdwg.mxu0
    %v422 = vmul.f32 %v418, %v186
    %v423 = vmul.f32 %v420, %v187
    %v424 = vadd.f32 %v340, %v422
    %v425 = vadd.f32 %v342, %v423
    %v426 = vld [vmem:[%s4] sm:$0x1]
    %v428 = vperm.slane %v426, 0
    %v430 = vadd.f32 %v424, %v428
    %v431 = vadd.f32 %v425, %v428
    %v432 = vmax.f32 %v430, 0.0
    %v433 = vmax.f32 %v431, 0.0
    %v434 = vld [vmem:[%s5] sm:$0xf]
    %v435 = vld [vmem:[%s5 + $0x4] sm:$0xf]
    %v436 = vld [vmem:[%s5 + $0x8] sm:$0xf]
    %v437 = vld [vmem:[%s5 + $0xc] sm:$0xf]
    %v438 = vld [vmem:[%s5 + $0x10] sm:$0xf]
    %v439 = vld [vmem:[%s5 + $0x14] sm:$0xf]
    %v440 = vld [vmem:[%s5 + $0x18] sm:$0xf]
    %v441 = vld [vmem:[%s5 + $0x1c] sm:$0xf]
    %v442 = vpack.c.bf16 %v433, %v432
    %v443 = vld [vmem:[%s6] sm:$0x1]
    %v445 = vperm.slane %v443, 0
    %v455 = vunpack.c.l.b16 %v434
    %v456 = vunpack.c.l.b16 %v435
    %v457 = vunpack.c.l.b16 %v436
    %v458 = vunpack.c.l.b16 %v437
    %v459 = vunpack.c.l.b16 %v438
    %v460 = vunpack.c.l.b16 %v439
    %v461 = vunpack.c.l.b16 %v440
    %v462 = vunpack.c.l.b16 %v441
    %v463 = vpack.c.b16 %v456, %v455
    %v464 = vpack.c.b16 %v458, %v457
    %v465 = vpack.c.b16 %v460, %v459
    %v466 = vpack.c.b16 %v462, %v461
    %vm471 = vcmask 523264
    %v473 = vsel %vm471, %v442, 0
    %475 = vmatpush.bf16.msra.mxu0 0
    %476 = vmatpush.bf16.msra.mxu0 0
    %477 = vmatpush.bf16.msra.mxu0 0
    %478 = vmatpush.bf16.msra.mxu0 0
    %479 = vmatpush.bf16.msra.mxu0 %v466
    %480 = vmatpush.bf16.msra.mxu0 %v465
    %481 = vmatpush.bf16.msra.mxu0 %v464
    %482 = vmatpush.bf16.msra.mxu0 %v463
    %483 = vmatmul.bf16.gmra.mxu0 %v473
    %v484 = vpop.f32.mrf.mxu0
    %v485 = vadd.f32 %v445, %v484
    %v486 = vpop.f32.mrf.mxu0
    %v487 = vadd.f32 %v445, %v486
    %488 = vdwg.mxu0
    %v489 = vmax.f32 %v485, 0.0
    %v490 = vmax.f32 %v487, 0.0
    %v491 = vld [vmem:[%s7] sm:$0x1]
    %v492 = vld [vmem:[#allocation2] sm:$0x1]
    %494 = vset.pattern.permute.xlu0 0
    %495 = vperm.xlu0 %494, %v492
    %v496 = vpop.permute.xlu0 %495
    %v498 = vperm.slane %v496, 0
    %vm499 = vcmask 261120
    %v501 = vsel %vm499, %v491, 0
    %v504 = vsel %vm499, %v489, 0
    %v507 = vsel %vm499, %v490, 0
    %509 = vmatpush.xpose.msra.mxu0 0.0
    %510 = vmatpush.xpose.msra.mxu0 0.0
    %511 = vmatpush.xpose.msra.mxu0 0.0
    %512 = vmatpush.xpose.msra.mxu0 0.0
    %513 = vmatpush.xpose.msra.mxu0 0.0
    %514 = vmatpush.xpose.msra.mxu0 0.0
    %515 = vmatpush.xpose.msra.mxu0 0.0
    %516 = vmatpush.xpose.msra.mxu0 0.0
    %517 = vmatpush.xpose.msra.mxu0 0.0
    %518 = vmatpush.xpose.msra.mxu0 0.0
    %519 = vmatpush.xpose.msra.mxu0 0.0
    %520 = vmatpush.xpose.msra.mxu0 0.0
    %521 = vmatpush.xpose.msra.mxu0 0.0
    %522 = vmatpush.xpose.msra.mxu0 0.0
    %523 = vmatpush.xpose.msra.mxu0 %v507
    %524 = vmatpush.xpose.msra.mxu0 %v504
    %525 = vmatmul.f32.gmra.mxu0 %v501
    %v526 = vpop.f32.mrf.mxu0
    %v527 = vadd.f32 %v498, %v526
    %528 = vdwg.mxu0
    %vm529 = vcmask 122880
    %530 = vst.msk [vmem:[#allocation3] sm:$0x1] %vm529, %v527
    // Predicated region
    $region38: #{tpu_custom_call.1} parent=1 // pred_check
      _
    $region39: #{tpu_custom_call.1} parent=1 // pred_check_branch
      %532 = sbr.rel (0) target = $region41
    $region40: #{tpu_custom_call.1} parent=1 // pred_region
      %534 = vsyncadd [#allocation4], 0
      %s536 = sshll.u32 [#allocation3], 4
      %s537 = int_to_ptr.vmem [resolvable:$true] %s536
      %s538 = sshll.u32 %s9, 4
      %s539 = int_to_ptr.hbm [resolvable:$true] %s538
      %541 = dma.vmem_to_hbm [thread:$0]  %s537, 16, %s539, [#allocation4]
    $region41: #{tpu_custom_call.1} parent=1 // pred_fallthru
      _
    // Predicated region
    $region42: #{tpu_custom_call.1} parent=1 // pred_check
      _
    $region43: #{tpu_custom_call.1} parent=1 // pred_check_branch
      %543 = sbr.rel (0) target = $region45
    $region44: #{tpu_custom_call.1} parent=1 // pred_region
      %545 = dma.done [#allocation4], 16
    $region45: #{tpu_custom_call.1} parent=1 // pred_fallthru
      _
    %546 = vsyncpa [#allocation4], 1

</llo_original>
